<compile_context>
chip_gen: v7x
topology: tpu7x:2x2x1
jax: 0.10.0
libtpu: 0.0.40
codegen_flags: <defaults>
</compile_context>

<pallas_src>
import functools

import jax
import jax.numpy as jnp
from jax.experimental import pallas as pl
from jax.experimental.pallas import tpu as pltpu


# ------------------------------------------------------------------ kernels
def _rgba_const_kernel(rgb_ref, out_ref, *, alpha: float):
    # Full-tile RGB copy + constant-alpha splat (synthesized in output dtype).
    out_ref[:, 0:3] = rgb_ref[...]
    out_ref[:, 3:4] = jnp.full(
        (out_ref.shape[0], 1) + tuple(out_ref.shape[2:]), alpha, dtype=out_ref.dtype
    )


def _rgba_tensor_kernel(rgb_ref, a_ref, out_ref):
    out_ref[:, 0:3] = rgb_ref[...]
    # Alpha is cast to the image dtype in-kernel (free, hidden under DMA).
    out_ref[:, 3:4] = a_ref[...].astype(out_ref.dtype)


# ------------------------------------------------------------------ helpers
def _cdiv(a: int, b: int) -> int:
    return -(-a // b)


def _round_down(x: int, m: int) -> int:
    return (x // m) * m


def _round_up(x: int, m: int) -> int:
    return _cdiv(x, m) * m


def _vmem_capacity_bytes() -> int:
    """Physical VMEM per TensorCore; conservative (v7x) fallback."""
    try:
        return int(pltpu.get_tpu_info().vmem_capacity_bytes)
    except Exception:
        return 64 * 1024 * 1024


# ------------------------------------------------------------------ wrapper
def rgb_to_rgba(image: jax.Array, alpha_val) -> jax.Array:
    """JAX/Pallas equivalent of kornia's rgb_to_rgba.

    image: (*, 3, H, W);  alpha_val: python float or array of shape (*, 1, H, W).
    Returns (*, 4, H, W) in image.dtype.
    """
    if image.ndim < 3 or image.shape[-3] != 3:
        raise ValueError(f"Input size must have shape (*, 3, H, W). Got {image.shape}")

    lead = image.shape[:-3]
    H, W = image.shape[-2], image.shape[-1]
    B = 1
    for d in lead:
        B *= d
    S = H * W
    dtype = image.dtype
    itemsize = jnp.dtype(dtype).itemsize

    tensor_alpha = not isinstance(alpha_val, (float, int))
    n_ch = 3 + 4 + (1 if tensor_alpha else 0)  # per-step HBM-traffic channels

    # Double-buffered VMEM footprint target, sized per generation.
    cap = _vmem_capacity_bytes()
    footprint_target = (56 << 20) if cap >= (96 << 20) else (28 << 20)

    if S % 128 == 0:
        # ---- Fully lane-dense path: flatten plane to (rows, lanes) --------
        # Lane width: largest multiple of 128 dividing S, capped at 2048.
        L = 128
        for k in range(min(S // 128, 16), 0, -1):
            if S % (128 * k) == 0:
                L = 128 * k
                break
        R = S // L
        # Rows per tile from the byte budget (tiles are dense: footprint ==
        # 2 buffers * traffic per step).
        elems = max(footprint_target // (2 * n_ch * itemsize), 1)
        tR = max(8, _round_down(max(elems // L, 1), 8))
        if tR >= R:
            tR = R  # full extent is always a legal block dim
        n_tiles = _cdiv(R, tR)
        # Megacore (v7x) balance: make sure the grid has >= 2 steps if possible.
        if B * n_tiles < 2 and R > 8:
            tR = _round_up(_cdiv(R, 2), 8)
            n_tiles = _cdiv(R, tR)

        x = image.reshape(B, 3, R, L)
        blk_rgb, blk_a, blk_out = (1, 3, tR, L), (1, 1, tR, L), (1, 4, tR, L)
        idx = lambda b, i: (b, 0, i, 0)
        grid = (B, n_tiles)
        out_struct = jax.ShapeDtypeStruct((B, 4, R, L), dtype)
        footprint = 2 * n_ch * tR * L * itemsize
    else:
        # ---- Fallback: tile the flattened plane directly (S not %128) -----
        # Block minor dims are (C, tS); C (1/3/4) pads to one native sublane
        # group, i.e. 32 bytes per lane per buffer, independent of dtype.
        n_bufs = 3 if tensor_alpha else 2
        tS = _round_down(max(footprint_target // (2 * n_bufs * 32), 128), 128)
        tS = min(tS, _round_up(S, 128))
        n_tiles = _cdiv(S, tS)
        if B * n_tiles < 2 and S > 128:
            tS = _round_up(_cdiv(S, 2), 128)
            n_tiles = _cdiv(S, tS)

        x = image.reshape(B, 3, S)
        blk_rgb, blk_a, blk_out = (1, 3, tS), (1, 1, tS), (1, 4, tS)
        idx = lambda b, j: (b, 0, j)
        grid = (B, n_tiles)
        out_struct = jax.ShapeDtypeStruct((B, 4, S), dtype)
        footprint = 2 * n_bufs * 32 * tS  # sublane-padded VMEM footprint

    # vmem limit = actual footprint + ~25% margin, floored at the 32 MiB
    # default and capped safely below physical VMEM.
    vmem_limit = min(
        max(footprint + footprint // 4 + (1 << 20), 32 << 20),
        max(cap - (8 << 20), 32 << 20),
    )
    cparams = pltpu.CompilerParams(
        dimension_semantics=("parallel", "parallel"),
        vmem_limit_bytes=int(vmem_limit),
    )

    rgb_spec = pl.BlockSpec(blk_rgb, idx)
    out_spec = pl.BlockSpec(blk_out, idx)

    if tensor_alpha:
        a = jnp.asarray(alpha_val).reshape(x.shape[0:1] + (1,) + x.shape[2:])
        a_spec = pl.BlockSpec(blk_a, idx)
        out = pl.pallas_call(
            _rgba_tensor_kernel,
            out_shape=out_struct,
            grid=grid,
            in_specs=[rgb_spec, a_spec],
            out_specs=out_spec,
            compiler_params=cparams,
        )(x, a)
    else:
        out = pl.pallas_call(
            functools.partial(_rgba_const_kernel, alpha=float(alpha_val)),
            out_shape=out_struct,
            grid=grid,
            in_specs=[rgb_spec],
            out_specs=out_spec,
            compiler_params=cparams,
        )(x)

    return out.reshape(*lead, 4, H, W)


class RgbToRgba:
    """Add an alpha channel to an RGB image: (*, 3, H, W) -> (*, 4, H, W)."""

    def __init__(self, alpha_val):
        self.alpha_val = alpha_val

    def __call__(self, image: jax.Array) -> jax.Array:
        return rgb_to_rgba(image, self.alpha_val)


# ------------------------------------------------------------------ main
if __name__ == "__main__":
    key = jax.random.PRNGKey(0)
    k1, k2, k3, k4 = jax.random.split(key, 4)

    # --- lane-dense path (H*W divisible by 128) ---
    B, H, W = 2, 16, 16
    image = jax.random.uniform(k1, (B, 3, H, W), dtype=jnp.float32)

    rgba_const = RgbToRgba(1.0)
    out_c = jax.block_until_ready(rgba_const(image))
    ref_c = jnp.concatenate(
        [image, jnp.full((B, 1, H, W), 1.0, dtype=image.dtype)], axis=1
    )
    assert out_c.shape == (B, 4, H, W)
    assert jnp.allclose(out_c, ref_c), "constant-alpha mismatch"

    alpha = jax.random.uniform(k2, (B, 1, H, W), dtype=jnp.float32)
    rgba_tensor = RgbToRgba(alpha)
    out_t = jax.block_until_ready(rgba_tensor(image))
    ref_t = jnp.concatenate([image, alpha], axis=1)
    assert out_t.shape == (B, 4, H, W)
    assert jnp.allclose(out_t, ref_t), "tensor-alpha mismatch"

    # --- fallback path (H*W NOT divisible by 128, e.g. odd sizes) ---
    H2, W2 = 5, 7
    image2 = jax.random.uniform(k3, (B, 3, H2, W2), dtype=jnp.float32)

    out_c2 = jax.block_until_ready(rgb_to_rgba(image2, 0.5))
    ref_c2 = jnp.concatenate(
        [image2, jnp.full((B, 1, H2, W2), 0.5, dtype=image2.dtype)], axis=1
    )
    assert out_c2.shape == (B, 4, H2, W2)
    assert jnp.allclose(out_c2, ref_c2), "constant-alpha mismatch (fallback)"

    alpha2 = jax.random.uniform(k4, (B, 1, H2, W2), dtype=jnp.float32)
    out_t2 = jax.block_until_ready(rgb_to_rgba(image2, alpha2))
    ref_t2 = jnp.concatenate([image2, alpha2], axis=1)
    assert out_t2.shape == (B, 4, H2, W2)
    assert jnp.allclose(out_t2, ref_t2), "tensor-alpha mismatch (fallback)"

    print("KERNEL_OK")
</pallas_src>

<mosaic_0001>
module attributes {stable_mosaic.version = 11 : i64} {
  func.func @_rgba_const_kernel(%arg0: i32, %arg1: i32, %arg2: memref<1x3x1x256xf32, #tpu.memory_space<vmem>>, %arg3: memref<1x4x1x256xf32, #tpu.memory_space<vmem>>) attributes {dimension_semantics = [#tpu.dimension_semantics<parallel>, #tpu.dimension_semantics<parallel>], iteration_bounds = array<i64: 2, 1>, scalar_prefetch = 0 : i64, scratch_operands = 0 : i64, tpu.core_type = #tpu.core_type<tc>, window_params = [{transform_indices = @transform_0, window_bounds = array<i64: 1, 3, 1, 256>}, {transform_indices = @transform_1, window_bounds = array<i64: 1, 4, 1, 256>}]} {
    %c0 = arith.constant 0 : index
    %c0_0 = arith.constant 0 : index
    %c0_1 = arith.constant 0 : index
    %c0_2 = arith.constant 0 : index
    %0 = vector.load %arg2[%c0, %c0_0, %c0_1, %c0_2] : memref<1x3x1x256xf32, #tpu.memory_space<vmem>>, vector<1x3x1x256xf32>
    %c0_3 = arith.constant 0 : index
    %c0_4 = arith.constant 0 : index
    %c0_5 = arith.constant 0 : index
    %c0_6 = arith.constant 0 : index
    %1 = vector.load %arg3[%c0_3, %c0_4, %c0_5, %c0_6] : memref<1x4x1x256xf32, #tpu.memory_space<vmem>>, vector<1x3x1x256xf32>
    tpu.vector_store %arg3[%c0_3, %c0_4, %c0_5, %c0_6], %0 {strides = array<i32>} : memref<1x4x1x256xf32, #tpu.memory_space<vmem>>, vector<1x3x1x256xf32>,
    %cst = arith.constant 1.000000e+00 : f32
    %2 = vector.broadcast %cst : f32 to vector<1x1x1x256xf32>
    %c0_7 = arith.constant 0 : index
    %c3 = arith.constant 3 : index
    %c0_8 = arith.constant 0 : index
    %c0_9 = arith.constant 0 : index
    %3 = vector.load %arg3[%c0_7, %c3, %c0_8, %c0_9] : memref<1x4x1x256xf32, #tpu.memory_space<vmem>>, vector<1x1x1x256xf32>
    tpu.vector_store %arg3[%c0_7, %c3, %c0_8, %c0_9], %2 {strides = array<i32>} : memref<1x4x1x256xf32, #tpu.memory_space<vmem>>, vector<1x1x1x256xf32>,
    return
  }
  func.func @transform_0(%arg0: i32, %arg1: i32) -> (i32, i32, i32, i32) {
    %c0_i32 = arith.constant 0 : i32
    %c0_i32_0 = arith.constant 0 : i32
    %c0_i32_1 = arith.constant 0 : i32
    return %arg0, %c0_i32, %arg1, %c0_i32_0 : i32, i32, i32, i32
  }
  func.func @transform_1(%arg0: i32, %arg1: i32) -> (i32, i32, i32, i32) {
    %c0_i32 = arith.constant 0 : i32
    %c0_i32_0 = arith.constant 0 : i32
    %c0_i32_1 = arith.constant 0 : i32
    return %arg0, %c0_i32, %arg1, %c0_i32_0 : i32, i32, i32, i32
  }
}

</mosaic_0001>

<llo_original>
// kernel: tpu_custom_call.1
$region0: #{tpu_custom_call.1}
  #allocation0 [shape = 'u32[]', space=smem, size = 0x4, offset = 0x4, fixed_abs, tag = 'smem constant byte address 0x4 - core index']
  #allocation1 [shape = 'u32[144,128]{1,0:T(1,128)}', space=vmem, size = 0x12000, scoped, tag = 'internal scratch']
  %s0 = inlined_call_operand.hbm [shape: f32[2,3,1,256], index: 0, kind: input, shape index: {}]
  %s1 = inlined_call_operand.hbm [shape: f32[2,4,1,256], index: 1, kind: output, shape index: {}]
  %s2 = sld [smem:[#allocation0]]
  $region41: #{tpu_custom_call.1} parent=0
    _
  %s4 = ssub.s32 1, %s2
  %s5 = scalar_select 0, %s4, %s2
  $region1: #{tpu_custom_call.1} parent=0
    #allocation2 [shape = 'u8[6144]{0}', space=vmem, size = 0x1800, scoped, tag = 'input window, operand 0']
    #allocation3 [shape = 's32[2]{0}', space=sflag, size = 0x8, scoped, tag = 'scoped memory for tpu_custom_call.1']
    #allocation4 [shape = 's32[2]{0}', space=sflag, size = 0x8, scoped, tag = 'scoped memory for tpu_custom_call.1']
    #allocation5 [shape = 'u8[8192]{0}', space=vmem, size = 0x2000, scoped, tag = 'output window, operand 0']
    %6 = vsyncpa [#allocation3], 0
    %s7 = scalar_lea.sflag [#allocation3], 1
    %8 = vsyncpa %s7, 0
    %9 = vsyncpa [#allocation4], 0
    %s10 = scalar_lea.sflag [#allocation4], 1
    %11 = vsyncpa %s10, 0
    loop: start=0, step=1, limit=4
    $region2: #{tpu_custom_call.1} parent=1 // loop_pre_header
      _
    $region3: #{tpu_custom_call.1} parent=1 // loop_header
      %s13 = sphi 0, %s17
      %p14 = scmp.ge.s32.totalorder %s13, 4
      %s20 = sphi 0, %s32
      %s21 = sphi 0, %s28
      %s22 = sphi 0, %s20
      %s23 = sphi 0, %s21
      %s24 = sphi 0, %s22
      %s25 = sphi 0, %s23
      %s37 = sphi 0, %s39
      %s40 = sphi 0, %s37
      %s41 = sphi 0, %s40
      %s57 = sphi 0, %s41
      %s65 = sphi 0, %s67
      %s68 = sphi 0, %s65
      %s69 = sphi 0, %s68
      %s85 = sphi 0, %s69
    $region4: #{tpu_custom_call.1} parent=1 // loop_header_branch
      %16 = sbr.rel (%p14) target = $region8
    $region5: #{tpu_custom_call.1} parent=1 // loop_body
      %s18 = ssub.s32 %s13, 1
      %s19 = ssub.s32 %s13, 2
      %s26 = sadd.s32 1, %s21
      %p27 = scmp.ge.s32.totalorder %s26, 1
      %s28 = scalar_select %p27, 0, %s26
      %s29 = sadd.s32 1, %s20
      %s30 = scalar_select %p27, %s29, %s20
      %p31 = scmp.ge.s32.totalorder %s30, 2
      %s32 = scalar_select %p31, 0, %s30
      %s33 = ssub.s32 %s20, %s32
      %s34 = ssub.s32 %s21, %s28
      %s35 = sor.u32 %s33, %s34
      %p36 = scmp.eq.s32.totalorder %s35, 0
      %s38 = sadd.s32 %s37, 1
      %s39 = scalar_select %p36, %s37, %s38
      %p42 = pneg %p36
      %p43 = scmp.eq.s32.totalorder %s13, 1
      %p44 = por %p42, %p43
      %p45 = scmp.ne.s32.totalorder %s37, %s40
      %p46 = scmp.eq.s32.totalorder %s13, 0
      %p47 = por %p45, %p46
      %p48 = scmp.ne.s32.totalorder %s37, %s40
      %p49 = scmp.eq.s32.totalorder %s18, 1
      %p50 = por %p48, %p49
      %p51 = scmp.ne.s32.totalorder %s40, %s41
      %p52 = scmp.eq.s32.totalorder %s18, 0
      %p53 = por %p51, %p52
      %p54 = scmp.ne.s32.totalorder %s40, %s41
      %p55 = scmp.eq.s32.totalorder %s19, 1
      %p56 = por %p54, %p55
      %p58 = scmp.ne.s32.totalorder %s41, %s57
      %p59 = scmp.eq.s32.totalorder %s19, 0
      %p60 = por %p58, %p59
      %s61 = ssub.s32 %s20, %s32
      %s62 = ssub.s32 %s21, %s28
      %s63 = sor.u32 %s61, %s62
      %p64 = scmp.eq.s32.totalorder %s63, 0
      %s66 = sadd.s32 %s65, 1
      %s67 = scalar_select %p64, %s65, %s66
      %p70 = pneg %p64
      %p71 = scmp.eq.s32.totalorder %s13, 1
      %p72 = por %p70, %p71
      %p73 = scmp.ne.s32.totalorder %s65, %s68
      %p74 = scmp.eq.s32.totalorder %s13, 0
      %p75 = por %p73, %p74
      %p76 = scmp.ne.s32.totalorder %s65, %s68
      %p77 = scmp.eq.s32.totalorder %s18, 1
      %p78 = por %p76, %p77
      %p79 = scmp.ne.s32.totalorder %s68, %s69
      %p80 = scmp.eq.s32.totalorder %s18, 0
      %p81 = por %p79, %p80
      %p82 = scmp.ne.s32.totalorder %s68, %s69
      %p83 = scmp.eq.s32.totalorder %s19, 1
      %p84 = por %p82, %p83
      %p86 = scmp.ne.s32.totalorder %s69, %s85
      %p87 = scmp.eq.s32.totalorder %s19, 0
      %p88 = por %p86, %p87
      %p89 = scmp.le.s32.totalorder 1, %s13
      %p90 = scmp.lt.s32.totalorder %s13, 3
      %p91 = pnand %p89, %p90
      %p92 = pneg %p91
      // Predicated region
      $region9: #{tpu_custom_call.1} parent=5 // pred_check
        _
      $region10: #{tpu_custom_call.1} parent=5 // pred_check_branch
        %94 = sbr.rel (%p91) target = $region12
      $region11: #{tpu_custom_call.1} parent=5 // pred_region
        %s95 = ssub.s32 %s13, 1
      $region12: #{tpu_custom_call.1} parent=5 // pred_fallthru
        _
      %p96 = scmp.lt.s32.totalorder %s13, 2
      // Predicated region
      $region13: #{tpu_custom_call.1} parent=5 // pred_check
        %p97 = pneg %p96
      $region14: #{tpu_custom_call.1} parent=5 // pred_check_branch
        %99 = sbr.rel (%p97) target = $region16
      $region15: #{tpu_custom_call.1} parent=5 // pred_region
        // Predicated region
        $region17: #{tpu_custom_call.1} parent=15 // pred_check
          %p100 = pneg %p47
        $region18: #{tpu_custom_call.1} parent=15 // pred_check_branch
          %102 = sbr.rel (%p100) target = $region20
        $region19: #{tpu_custom_call.1} parent=15 // pred_region
          %s103 = sand.u32 %s37, 1
          %s104 = scalar_lea.sflag [#allocation3], %s103
          %s105 = sand.u32 %s37, 1
          %s106 = smul.addr %s105, 6
          %s107 = scalar_lea.vmem [#allocation2], %s106
          %s109 = ssub.s32 96, 96
          %110 = vsyncadd %s104, %s109
          %s111 = smul.addr %s21, 2
          %s112 = smul.addr %s20, 6
          %s113 = sadd.s32 %s111, %s112
          %s114 = smul.addr %s113, 16
          %s115 = scalar_lea.hbm %s0, %s114
          %s116 = sshll.u32 %s107, 4
          %s117 = int_to_ptr.vmem [resolvable:$true] %s116
          %122 = dma.hbm_to_vmem [thread:$0]  %s115, 96, %s117, %s104, 32, 32, 2
        $region20: #{tpu_custom_call.1} parent=15 // pred_fallthru
          _
      $region16: #{tpu_custom_call.1} parent=5 // pred_fallthru
        _
      %p123 = scmp.le.s32.totalorder 1, %s13
      %p124 = scmp.lt.s32.totalorder %s13, 3
      %p125 = pnand %p123, %p124
      %p126 = pneg %p125
      // Predicated region
      $region21: #{tpu_custom_call.1} parent=5 // pred_check
        _
      $region22: #{tpu_custom_call.1} parent=5 // pred_check_branch
        %128 = sbr.rel (%p125) target = $region24
      $region23: #{tpu_custom_call.1} parent=5 // pred_region
        %s129 = ssub.s32 %s13, 1
        %s130 = sand.u32 %s40, 1
        %s131 = scalar_lea.sflag [#allocation3], %s130
        %s132 = sand.u32 %s40, 1
        %s133 = smul.addr %s132, 6
        %s134 = scalar_lea.vmem [#allocation2], %s133
        // Predicated region
        $region25: #{tpu_custom_call.1} parent=23 // pred_check
          %p135 = pneg %p53
        $region26: #{tpu_custom_call.1} parent=23 // pred_check_branch
          %137 = sbr.rel (%p135) target = $region28
        $region27: #{tpu_custom_call.1} parent=23 // pred_region
          %138 = dma.done %s131, 96
        $region28: #{tpu_custom_call.1} parent=23 // pred_fallthru
          _
        %s139 = sand.u32 %s40, 1
        %s140 = scalar_lea.sflag [#allocation3], %s139
        %s141 = sand.u32 %s40, 1
        %s142 = smul.addr %s141, 6
        %s143 = scalar_lea.vmem [#allocation2], %s142
        %p144 = pneg %p53
        %p145 = pneg %p50
        %p146 = pneg %p81
        %p147 = pneg %p78
        %s148 = sand.u32 %s68, 1
        %s149 = scalar_lea.sflag [#allocation4], %s148
        %s150 = sand.u32 %s68, 1
        %s151 = smul.addr %s150, 8
        %s152 = scalar_lea.vmem [#allocation5], %s151
        %v153 = vld [vmem:[%s134] sm:$0x3]
        %v154 = vld [vmem:[%s134 + $0x2] sm:$0x3]
        %v155 = vld [vmem:[%s134 + $0x4] sm:$0x3]
        %v156 = vlaneseq
        %vm157 = vcmp.ge.s32.totalorder %v156, 0
        %vm158 = vcmp.lt.s32.totalorder %v156, 256
        %vm159 = vmand %vm157, %vm158
        %160 = vst.msk [vmem:[%s152] sm:$0x3] %vm159, %v153
        %161 = vst.msk [vmem:[%s152 + $0x2] sm:$0x3] %vm159, %v154
        %162 = vst.msk [vmem:[%s152 + $0x4] sm:$0x3] %vm159, %v155
        %s163 = scalar_lea.vmem %s152, 6 [#allocation5]
        %164 = vst.msk [vmem:[%s163] sm:$0x3] %vm159, 1.0
        %s165 = sand.u32 %s68, 1
        %s166 = scalar_lea.sflag [#allocation4], %s165
        %s167 = sand.u32 %s68, 1
        %s168 = smul.addr %s167, 8
        %s169 = scalar_lea.vmem [#allocation5], %s168
        // Predicated region
        $region29: #{tpu_custom_call.1} parent=23 // pred_check
          %p170 = pneg %p78
        $region30: #{tpu_custom_call.1} parent=23 // pred_check_branch
          %172 = sbr.rel (%p170) target = $region32
        $region31: #{tpu_custom_call.1} parent=23 // pred_region
          %s174 = ssub.s32 128, 128
          %175 = vsyncadd %s166, %s174
          %s176 = smul.addr %s23, 2
          %s177 = smul.addr %s22, 8
          %s178 = sadd.s32 %s176, %s177
          %s179 = smul.addr %s178, 16
          %s180 = scalar_lea.hbm %s1, %s179
          %s181 = sshll.u32 %s169, 4
          %s182 = int_to_ptr.vmem [resolvable:$true] %s181
          %187 = dma.vmem_to_hbm [thread:$0]  %s182, 128, %s180, %s166, 32, 32, 2
        $region32: #{tpu_custom_call.1} parent=23 // pred_fallthru
          _
      $region24: #{tpu_custom_call.1} parent=5 // pred_fallthru
        _
      %p188 = scmp.le.s32.totalorder 2, %s13
      // Predicated region
      $region33: #{tpu_custom_call.1} parent=5 // pred_check
        %p189 = pneg %p188
      $region34: #{tpu_custom_call.1} parent=5 // pred_check_branch
        %191 = sbr.rel (%p189) target = $region36
      $region35: #{tpu_custom_call.1} parent=5 // pred_region
        %s192 = ssub.s32 %s13, 2
        // Predicated region
        $region37: #{tpu_custom_call.1} parent=35 // pred_check
          %p193 = pneg %p84
        $region38: #{tpu_custom_call.1} parent=35 // pred_check_branch
          %195 = sbr.rel (%p193) target = $region40
        $region39: #{tpu_custom_call.1} parent=35 // pred_region
          %s196 = sand.u32 %s69, 1
          %s197 = scalar_lea.sflag [#allocation4], %s196
          %s198 = sand.u32 %s69, 1
          %s199 = smul.addr %s198, 8
          %s200 = scalar_lea.vmem [#allocation5], %s199
          %201 = dma.done %s197, 128
        $region40: #{tpu_custom_call.1} parent=35 // pred_fallthru
          _
      $region36: #{tpu_custom_call.1} parent=5 // pred_fallthru
        _
    $region6: #{tpu_custom_call.1} parent=1 // loop_footer
      %s17 = sadd.s32 1, %s13
    $region7: #{tpu_custom_call.1} parent=1 // loop_footer_branch
      %12 = sbr.rel target = $region3
    $region8: #{tpu_custom_call.1} parent=1 // loop_exit
      _
    %202 = vsyncpa [#allocation3], 1
    %s203 = scalar_lea.sflag [#allocation3], 1
    %204 = vsyncpa %s203, 1
    %205 = vsyncpa [#allocation4], 1
    %s206 = scalar_lea.sflag [#allocation4], 1
    %207 = vsyncpa %s206, 1

</llo_original>
